<compile_context>
chip_gen: v7x
topology: tpu7x:2x2x1
jax: 0.10.0
libtpu: 0.0.40
codegen_flags: <defaults>
</compile_context>

<pallas_src>
import functools
import math

import numpy as np
import jax
import jax.numpy as jnp
from jax import lax
from jax.experimental import pallas as pl
from jax.experimental.pallas import tpu as pltpu


def _pair(v):
    if isinstance(v, (tuple, list)):
        return tuple(v)
    return (v, v)


def _normalize_padding(padding, kernel_size, stride, dilation):
    """Return ((ph_l, ph_r), (pw_l, pw_r)) following torch Conv2d semantics."""
    if isinstance(padding, str):
        if padding == "valid":
            return (0, 0), (0, 0)
        if padding == "same":
            if any(s != 1 for s in stride):
                raise ValueError("padding='same' is not supported for strided convolutions")
            pads = []
            for k, d in zip(kernel_size, dilation):
                total = d * (k - 1)
                left = total // 2
                pads.append((left, total - left))
            return tuple(pads)
        raise ValueError(f"Invalid padding string {padding!r}")
    ph, pw = _pair(padding)
    return (ph, ph), (pw, pw)


def _pick_row_tile(h_out, fixed_bytes, per_row_bytes, budget):
    """Largest divisor of h_out (whole face, or a multiple of 8) fitting budget."""
    valid = [d for d in range(1, h_out + 1)
             if h_out % d == 0 and (d == h_out or d % 8 == 0)]
    fitting = [d for d in valid if fixed_bytes + d * per_row_bytes <= budget]
    if fitting:
        return max(fitting)
    # TODO(synk): halo-tile the face input (manual DMA) for very large H*W*C.
    return min(valid)


def _make_face_kernel(N, TH, KH, sh, dh, K_fold, NC):
    """Per-(face, row-tile) body: KH lane-dense row slabs -> one MXU matmul."""
    M = N * TH

    def kernel(x_ref, w_ref, b_ref, o_ref):
        # x_ref : (N, H_pad, W_pad*C_in)      whole face, lane-dense minor dim
        # w_ref : (KH*W_pad*C_in, W_out*C_out)  banded/Toeplitz packed weights
        # b_ref : (1, W_out*C_out)            bias tiled over W_out (f32)
        # o_ref : (N, TH, W_out*C_out)        lane-dense output tile
        i = pl.program_id(1)
        row0 = i * (TH * sh)

        taps = []
        for kh in range(KH):
            start = row0 + kh * dh
            if sh == 1:
                taps.append(x_ref[:, pl.ds(start, TH), :])
            else:
                # TODO(synk): strided-H ref read (sh > 1) is untested on hardware.
                taps.append(x_ref[:, pl.ds(start, TH, stride=sh), :])

        # Lane-axis concatenate (XLU) instead of masked scratch stores.
        lhs = taps[0] if KH == 1 else jnp.concatenate(taps, axis=-1)
        lhs = lhs.reshape(M, K_fold)                     # leading-dim fold only

        acc = jnp.dot(lhs, w_ref[...], preferred_element_type=jnp.float32)
        acc = acc + b_ref[...]                           # bias held in f32
        o_ref[...] = acc.reshape(N, TH, NC).astype(o_ref.dtype)

    return kernel


def cube_sphere_conv2d(x, weights, biases=None, *, stride=(1, 1), padding=(0, 0),
                       dilation=(1, 1), padding_mode="zeros", mxu_dtype=None):
    """Forward pass of CubeSphereConv2DSingleNode.

    x       : (N, C_in, 5, H, W)
    weights : list of 5 arrays, each (C_out, C_in, KH, KW)
              [eq_w0, eq_w1, eq_w2, eq_w3, polar_w]
    biases  : list of 5 arrays, each (C_out,), or None
    returns : (N, C_out, 5, H_out, W_out)
    """
    stride = _pair(stride)
    dilation = _pair(dilation)
    sh, sw = stride
    dh, dw = dilation
    if padding_mode not in ("zeros", "replicate"):
        raise ValueError("padding_mode must be 'zeros' or 'replicate'")

    N, C_in, F, H, W = x.shape
    assert F == 5, "cube-sphere input must have 5 faces on axis 2"
    C_out, c_in_w, KH, KW = weights[0].shape
    assert c_in_w == C_in

    (ph_l, ph_r), (pw_l, pw_r) = _normalize_padding(padding, (KH, KW), stride, dilation)
    H_pad = H + ph_l + ph_r
    W_pad = W + pw_l + pw_r
    H_out = (H_pad - dh * (KH - 1) - 1) // sh + 1
    W_out = (W_pad - dw * (KW - 1) - 1) // sw + 1

    compute_dtype = jnp.dtype(mxu_dtype) if mxu_dtype is not None else jnp.dtype(x.dtype)
    out_dtype = x.dtype

    WCI = W_pad * C_in          # folded lane dim of the input face
    K_fold = KH * WCI           # matmul contraction depth
    NC = W_out * C_out          # folded lane dim of the output

    # ---- wrapper glue (plain JAX): layout fold, spatial pad, weight packing ----
    xf = jnp.transpose(x, (2, 0, 3, 4, 1))                       # (5, N, H, W, C_in)
    if ph_l or ph_r or pw_l or pw_r:
        mode = "constant" if padding_mode == "zeros" else "edge"  # edge == replicate
        xf = jnp.pad(xf, ((0, 0), (0, 0), (ph_l, ph_r), (pw_l, pw_r), (0, 0)), mode=mode)
    xf = xf.reshape(5, N, H_pad, WCI).astype(compute_dtype)      # fold (W, C_in)

    # Banded / block-Toeplitz weight absorbing the (kw, ci) contraction and the
    # W-stride/dilation:
    #   bigw[f, kh*WCI + wi*C_in + ci, wo*C_out + co]
    #     = weights[f][co, ci, kh, kw]   if wi == wo*sw + kw*dw   else 0
    w_t = jnp.transpose(jnp.stack(weights, 0), (0, 3, 4, 2, 1))  # (5, KH, KW, C_in, C_out)
    sel = np.zeros((KW, W_pad, W_out), np.float32)
    for kw in range(KW):
        for wo in range(W_out):
            sel[kw, wo * sw + kw * dw, wo] = 1.0
    bigw = jnp.einsum("fhkic,kwz->fhwizc", w_t.astype(jnp.float32), jnp.asarray(sel))
    bigw = bigw.reshape(5, K_fold, NC).astype(compute_dtype)

    if biases is None:
        bias = jnp.zeros((5, C_out), jnp.float32)
    else:
        bias = jnp.stack(biases, 0).astype(jnp.float32)
    bias = jnp.tile(bias, (1, W_out)).reshape(5, 1, NC)          # col wo*C_out+co -> b[co]

    # ---- tile selection + explicit VMEM budget ----
    in_isz = compute_dtype.itemsize
    out_isz = jnp.dtype(out_dtype).itemsize
    fixed_bytes = 2 * (N * H_pad * WCI * in_isz + K_fold * NC * in_isz + NC * 4)
    per_row_bytes = 2 * N * (NC * out_isz + K_fold * in_isz + NC * 4)
    TH = _pick_row_tile(H_out, fixed_bytes, per_row_bytes, budget=40 << 20)
    vmem_limit = int(min(max(fixed_bytes + TH * per_row_bytes + (2 << 20), 16 << 20),
                         64 << 20))

    kernel = _make_face_kernel(N, TH, KH, sh, dh, K_fold, NC)

    out_f = pl.pallas_call(
        kernel,
        out_shape=jax.ShapeDtypeStruct((5, N, H_out, NC), out_dtype),
        grid_spec=pltpu.PrefetchScalarGridSpec(
            num_scalar_prefetch=0,
            grid=(5, H_out // TH),               # face outermost, row tiles inner
            in_specs=[
                # whole face (lane-dense), resident across its row tiles
                pl.BlockSpec((None, N, H_pad, WCI), lambda f, i: (f, 0, 0, 0)),
                # banded weights for this face
                pl.BlockSpec((None, K_fold, NC), lambda f, i: (f, 0, 0)),
                # tiled bias for this face
                pl.BlockSpec((None, 1, NC), lambda f, i: (f, 0, 0)),
            ],
            out_specs=pl.BlockSpec((None, N, TH, NC), lambda f, i: (f, 0, i, 0)),
        ),
        compiler_params=pltpu.CompilerParams(
            dimension_semantics=("parallel", "arbitrary"),
            vmem_limit_bytes=vmem_limit),
    )(xf, bigw, bias)

    out = out_f.reshape(5, N, H_out, W_out, C_out)               # unfold (W_out, C_out)
    return jnp.transpose(out, (1, 4, 0, 2, 3))                   # (N, C_out, 5, H_out, W_out)


def _reference_forward(x, weights, biases, stride, padding, dilation):
    """Pure-JAX reference mirroring the PyTorch module (zeros padding mode)."""
    stride = _pair(stride)
    padding = _pair(padding)
    dilation = _pair(dilation)
    outs = []
    for p in range(5):
        o = lax.conv_general_dilated(
            x[:, :, p], weights[p],
            window_strides=stride,
            padding=[(padding[0], padding[0]), (padding[1], padding[1])],
            rhs_dilation=dilation,
            dimension_numbers=("NCHW", "OIHW", "NCHW"),
            precision=lax.Precision.HIGHEST,
        )
        o = o + biases[p][None, :, None, None]
        outs.append(o[:, :, None])
    return jnp.concatenate(outs, axis=2)


def _init_params(key, in_channels, out_channels, kernel_size):
    """Deterministic init matching PyTorch kaiming_uniform_(a=sqrt(5)) scheme."""
    KH, KW = kernel_size
    fan_in = in_channels * KH * KW
    bound = 1.0 / math.sqrt(fan_in)
    keys = jax.random.split(key, 10)
    weights, biases = [], []
    for i in range(5):
        w = jax.random.uniform(keys[2 * i], (out_channels, in_channels, KH, KW),
                               minval=-bound, maxval=bound, dtype=jnp.float32)
        b = jax.random.uniform(keys[2 * i + 1], (out_channels,),
                               minval=-bound, maxval=bound, dtype=jnp.float32)
        weights.append(w)
        biases.append(b)
    return weights, biases


if __name__ == "__main__":
    # Module-consistent small shapes: N=2, C_in=4, faces=5, H=W=16, C_out=8,
    # kernel 3x3, stride 1, padding 1, dilation 1, padding_mode='zeros'.
    N, C_in, C_out, H, W = 2, 4, 8, 16, 16
    kernel_size = (3, 3)
    stride, padding, dilation = (1, 1), (1, 1), (1, 1)

    key = jax.random.PRNGKey(0)
    kx, kp = jax.random.split(key)
    x = jax.random.normal(kx, (N, C_in, 5, H, W), dtype=jnp.float32)
    weights, biases = _init_params(kp, C_in, C_out, kernel_size)

    fwd = jax.jit(functools.partial(cube_sphere_conv2d, stride=stride,
                                    padding=padding, dilation=dilation,
                                    padding_mode="zeros"))
    out = jax.block_until_ready(fwd(x, weights, biases))

    ref = jax.block_until_ready(
        _reference_forward(x, weights, biases, stride, padding, dilation))

    assert out.shape == (N, C_out, 5, H, W), out.shape
    max_err = jnp.max(jnp.abs(out - ref))
    assert jnp.allclose(out, ref, rtol=1e-4, atol=1e-4), f"max abs err {max_err}"

    print("KERNEL_OK")
</pallas_src>

<mosaic_0001>
module attributes {stable_mosaic.version = 11 : i64} {
  func.func @kernel(%arg0: i32, %arg1: i32, %arg2: memref<1x2x18x72xf32, #tpu.memory_space<vmem>>, %arg3: memref<1x216x128xf32, #tpu.memory_space<vmem>>, %arg4: memref<1x1x128xf32, #tpu.memory_space<vmem>>, %arg5: memref<1x2x16x128xf32, #tpu.memory_space<vmem>>) attributes {dimension_semantics = [#tpu.dimension_semantics<parallel>, #tpu.dimension_semantics<arbitrary>], iteration_bounds = array<i64: 5, 1>, scalar_prefetch = 0 : i64, scratch_operands = 0 : i64, tpu.core_type = #tpu.core_type<tc>, window_params = [{transform_indices = @transform_0, window_bounds = array<i64: 1, 2, 18, 72>}, {transform_indices = @transform_1, window_bounds = array<i64: 1, 216, 128>}, {transform_indices = @transform_2, window_bounds = array<i64: 1, 1, 128>}, {transform_indices = @transform_3, window_bounds = array<i64: 1, 2, 16, 128>}]} {
    %c16_i32 = arith.constant 16 : i32
    %0 = arith.muli %arg1, %c16_i32 : i32
    %c0_i32 = arith.constant 0 : i32
    %1 = arith.addi %0, %c0_i32 : i32
    %c0 = arith.constant 0 : index
    %c0_0 = arith.constant 0 : index
    %2 = arith.index_cast %1 : i32 to index
    %c0_1 = arith.constant 0 : index
    %3 = vector.load %arg2[%c0, %c0_0, %2, %c0_1] : memref<1x2x18x72xf32, #tpu.memory_space<vmem>>, vector<1x2x16x72xf32>
    %4 = vector.shape_cast %3 : vector<1x2x16x72xf32> to vector<2x16x72xf32>
    %c1_i32 = arith.constant 1 : i32
    %5 = arith.addi %0, %c1_i32 : i32
    %c0_2 = arith.constant 0 : index
    %c0_3 = arith.constant 0 : index
    %6 = arith.index_cast %5 : i32 to index
    %c0_4 = arith.constant 0 : index
    %7 = vector.load %arg2[%c0_2, %c0_3, %6, %c0_4] : memref<1x2x18x72xf32, #tpu.memory_space<vmem>>, vector<1x2x16x72xf32>
    %8 = vector.shape_cast %7 : vector<1x2x16x72xf32> to vector<2x16x72xf32>
    %c2_i32 = arith.constant 2 : i32
    %9 = arith.addi %0, %c2_i32 : i32
    %c0_5 = arith.constant 0 : index
    %c0_6 = arith.constant 0 : index
    %10 = arith.index_cast %9 : i32 to index
    %c0_7 = arith.constant 0 : index
    %11 = vector.load %arg2[%c0_5, %c0_6, %10, %c0_7] : memref<1x2x18x72xf32, #tpu.memory_space<vmem>>, vector<1x2x16x72xf32>
    %12 = vector.shape_cast %11 : vector<1x2x16x72xf32> to vector<2x16x72xf32>
    %13 = tpu.concatenate %4, %8, %12 in 2 : vector<2x16x72xf32>, vector<2x16x72xf32>, vector<2x16x72xf32> -> vector<2x16x216xf32>
    %14 = vector.shape_cast %13 : vector<2x16x216xf32> to vector<32x216xf32>
    %c0_8 = arith.constant 0 : index
    %c0_9 = arith.constant 0 : index
    %c0_10 = arith.constant 0 : index
    %15 = vector.load %arg3[%c0_8, %c0_9, %c0_10] : memref<1x216x128xf32, #tpu.memory_space<vmem>>, vector<1x216x128xf32>
    %16 = vector.shape_cast %15 : vector<1x216x128xf32> to vector<216x128xf32>
    %cst = arith.constant dense<0.000000e+00> : vector<32x128xf32>
    %17 = tpu.matmul %14, %16, %cst {dimension_numbers = #tpu.dot_dimension_numbers<[1], [0], [0], [1], [0, 0, 1, 1], [], []>} : vector<32x216xf32>, vector<216x128xf32>, vector<32x128xf32> -> vector<32x128xf32>
    %c0_11 = arith.constant 0 : index
    %c0_12 = arith.constant 0 : index
    %c0_13 = arith.constant 0 : index
    %18 = vector.load %arg4[%c0_11, %c0_12, %c0_13] : memref<1x1x128xf32, #tpu.memory_space<vmem>>, vector<1x1x128xf32>
    %19 = vector.shape_cast %18 : vector<1x1x128xf32> to vector<1x128xf32>
    %20 = vector.broadcast %19 : vector<1x128xf32> to vector<32x128xf32>
    %21 = arith.addf %17, %20 : vector<32x128xf32>
    %22 = vector.shape_cast %21 : vector<32x128xf32> to vector<2x16x128xf32>
    %c0_14 = arith.constant 0 : index
    %c0_15 = arith.constant 0 : index
    %c0_16 = arith.constant 0 : index
    %c0_17 = arith.constant 0 : index
    %23 = vector.load %arg5[%c0_14, %c0_15, %c0_16, %c0_17] : memref<1x2x16x128xf32, #tpu.memory_space<vmem>>, vector<1x2x16x128xf32>
    %24 = vector.shape_cast %23 : vector<1x2x16x128xf32> to vector<2x16x128xf32>
    %25 = vector.shape_cast %22 : vector<2x16x128xf32> to vector<1x2x16x128xf32>
    tpu.vector_store %arg5[%c0_14, %c0_15, %c0_16, %c0_17], %25 {strides = array<i32>} : memref<1x2x16x128xf32, #tpu.memory_space<vmem>>, vector<1x2x16x128xf32>,
    return
  }
  func.func @transform_0(%arg0: i32, %arg1: i32) -> (i32, i32, i32, i32) {
    %c0_i32 = arith.constant 0 : i32
    %c0_i32_0 = arith.constant 0 : i32
    %c0_i32_1 = arith.constant 0 : i32
    %c0_i32_2 = arith.constant 0 : i32
    return %arg0, %c0_i32, %c0_i32_0, %c0_i32_1 : i32, i32, i32, i32
  }
  func.func @transform_1(%arg0: i32, %arg1: i32) -> (i32, i32, i32) {
    %c0_i32 = arith.constant 0 : i32
    %c0_i32_0 = arith.constant 0 : i32
    %c0_i32_1 = arith.constant 0 : i32
    return %arg0, %c0_i32, %c0_i32_0 : i32, i32, i32
  }
  func.func @transform_2(%arg0: i32, %arg1: i32) -> (i32, i32, i32) {
    %c0_i32 = arith.constant 0 : i32
    %c0_i32_0 = arith.constant 0 : i32
    %c0_i32_1 = arith.constant 0 : i32
    return %arg0, %c0_i32, %c0_i32_0 : i32, i32, i32
  }
  func.func @transform_3(%arg0: i32, %arg1: i32) -> (i32, i32, i32, i32) {
    %c0_i32 = arith.constant 0 : i32
    %c0_i32_0 = arith.constant 0 : i32
    %c0_i32_1 = arith.constant 0 : i32
    return %arg0, %c0_i32, %arg1, %c0_i32_0 : i32, i32, i32, i32
  }
}

</mosaic_0001>

<llo_original>
// kernel: cube_sphere_conv2d.1
$region0: #{cube_sphere_conv2d.1}
  #allocation0 [shape = 'u32[]', space=smem, size = 0x4, offset = 0x4, fixed_abs, tag = 'smem constant byte address 0x4 - core index']
  #allocation1 [shape = 'u32[144,128]{1,0:T(1,128)}', space=vmem, size = 0x12000, scoped, tag = 'internal scratch']
  %s0 = inlined_call_operand.vmem [shape: f32[5,2,18,72], index: 0, kind: input, shape index: {}]
  %s1 = inlined_call_operand.vmem [shape: f32[5,216,128], index: 1, kind: input, shape index: {}]
  %s2 = inlined_call_operand.vmem [shape: f32[5,1,128], index: 2, kind: input, shape index: {}]
  %s3 = inlined_call_operand.vmem [shape: f32[5,2,16,128], index: 3, kind: output, shape index: {}]
  %s4 = sld [smem:[#allocation0]]
  $region45: #{cube_sphere_conv2d.1} parent=0
    _
  %s6 = ssub.s32 1, %s4
  %s7 = scalar_select 0, %s6, %s4
  loop: start=0, step=1, limit=7
  $region2: #{cube_sphere_conv2d.1} parent=0 // loop_pre_header
    _
  $region3: #{cube_sphere_conv2d.1} parent=0 // loop_header
    %s9 = sphi 0, %s13
    %p10 = scmp.ge.s32.totalorder %s9, 7
    %s16 = sphi 0, %s28
    %s17 = sphi 0, %s24
    %s18 = sphi 0, %s16
    %s19 = sphi 0, %s17
    %s20 = sphi 0, %s18
    %s21 = sphi 0, %s19
    %s31 = sphi 0, %s33
    %s34 = sphi 0, %s31
    %s35 = sphi 0, %s34
    %s51 = sphi 0, %s35
    %s57 = sphi 0, %s59
    %s60 = sphi 0, %s57
    %s61 = sphi 0, %s60
    %s77 = sphi 0, %s61
    %s83 = sphi 0, %s85
    %s86 = sphi 0, %s83
    %s87 = sphi 0, %s86
    %s103 = sphi 0, %s87
    %s111 = sphi 0, %s113
    %s114 = sphi 0, %s111
    %s115 = sphi 0, %s114
    %s131 = sphi 0, %s115
  $region4: #{cube_sphere_conv2d.1} parent=0 // loop_header_branch
    %12 = sbr.rel (%p10) target = $region8
  $region5: #{cube_sphere_conv2d.1} parent=0 // loop_body
    %s14 = ssub.s32 %s9, 1
    %s15 = ssub.s32 %s9, 2
    %s22 = sadd.s32 1, %s17
    %p23 = scmp.ge.s32.totalorder %s22, 1
    %s24 = scalar_select %p23, 0, %s22
    %s25 = sadd.s32 1, %s16
    %s26 = scalar_select %p23, %s25, %s16
    %p27 = scmp.ge.s32.totalorder %s26, 5
    %s28 = scalar_select %p27, 0, %s26
    %s29 = ssub.s32 %s16, %s28
    %p30 = scmp.eq.s32.totalorder %s29, 0
    %s32 = sadd.s32 %s31, 1
    %s33 = scalar_select %p30, %s31, %s32
    %p36 = pneg %p30
    %p37 = scmp.eq.s32.totalorder %s9, 4
    %p38 = por %p36, %p37
    %p39 = scmp.ne.s32.totalorder %s31, %s34
    %p40 = scmp.eq.s32.totalorder %s9, 0
    %p41 = por %p39, %p40
    %p42 = scmp.ne.s32.totalorder %s31, %s34
    %p43 = scmp.eq.s32.totalorder %s14, 4
    %p44 = por %p42, %p43
    %p45 = scmp.ne.s32.totalorder %s34, %s35
    %p46 = scmp.eq.s32.totalorder %s14, 0
    %p47 = por %p45, %p46
    %p48 = scmp.ne.s32.totalorder %s34, %s35
    %p49 = scmp.eq.s32.totalorder %s15, 4
    %p50 = por %p48, %p49
    %p52 = scmp.ne.s32.totalorder %s35, %s51
    %p53 = scmp.eq.s32.totalorder %s15, 0
    %p54 = por %p52, %p53
    %s55 = ssub.s32 %s16, %s28
    %p56 = scmp.eq.s32.totalorder %s55, 0
    %s58 = sadd.s32 %s57, 1
    %s59 = scalar_select %p56, %s57, %s58
    %p62 = pneg %p56
    %p63 = scmp.eq.s32.totalorder %s9, 4
    %p64 = por %p62, %p63
    %p65 = scmp.ne.s32.totalorder %s57, %s60
    %p66 = scmp.eq.s32.totalorder %s9, 0
    %p67 = por %p65, %p66
    %p68 = scmp.ne.s32.totalorder %s57, %s60
    %p69 = scmp.eq.s32.totalorder %s14, 4
    %p70 = por %p68, %p69
    %p71 = scmp.ne.s32.totalorder %s60, %s61
    %p72 = scmp.eq.s32.totalorder %s14, 0
    %p73 = por %p71, %p72
    %p74 = scmp.ne.s32.totalorder %s60, %s61
    %p75 = scmp.eq.s32.totalorder %s15, 4
    %p76 = por %p74, %p75
    %p78 = scmp.ne.s32.totalorder %s61, %s77
    %p79 = scmp.eq.s32.totalorder %s15, 0
    %p80 = por %p78, %p79
    %s81 = ssub.s32 %s16, %s28
    %p82 = scmp.eq.s32.totalorder %s81, 0
    %s84 = sadd.s32 %s83, 1
    %s85 = scalar_select %p82, %s83, %s84
    %p88 = pneg %p82
    %p89 = scmp.eq.s32.totalorder %s9, 4
    %p90 = por %p88, %p89
    %p91 = scmp.ne.s32.totalorder %s83, %s86
    %p92 = scmp.eq.s32.totalorder %s9, 0
    %p93 = por %p91, %p92
    %p94 = scmp.ne.s32.totalorder %s83, %s86
    %p95 = scmp.eq.s32.totalorder %s14, 4
    %p96 = por %p94, %p95
    %p97 = scmp.ne.s32.totalorder %s86, %s87
    %p98 = scmp.eq.s32.totalorder %s14, 0
    %p99 = por %p97, %p98
    %p100 = scmp.ne.s32.totalorder %s86, %s87
    %p101 = scmp.eq.s32.totalorder %s15, 4
    %p102 = por %p100, %p101
    %p104 = scmp.ne.s32.totalorder %s87, %s103
    %p105 = scmp.eq.s32.totalorder %s15, 0
    %p106 = por %p104, %p105
    %s107 = ssub.s32 %s16, %s28
    %s108 = ssub.s32 %s17, %s24
    %s109 = sor.u32 %s107, %s108
    %p110 = scmp.eq.s32.totalorder %s109, 0
    %s112 = sadd.s32 %s111, 1
    %s113 = scalar_select %p110, %s111, %s112
    %p116 = pneg %p110
    %p117 = scmp.eq.s32.totalorder %s9, 4
    %p118 = por %p116, %p117
    %p119 = scmp.ne.s32.totalorder %s111, %s114
    %p120 = scmp.eq.s32.totalorder %s9, 0
    %p121 = por %p119, %p120
    %p122 = scmp.ne.s32.totalorder %s111, %s114
    %p123 = scmp.eq.s32.totalorder %s14, 4
    %p124 = por %p122, %p123
    %p125 = scmp.ne.s32.totalorder %s114, %s115
    %p126 = scmp.eq.s32.totalorder %s14, 0
    %p127 = por %p125, %p126
    %p128 = scmp.ne.s32.totalorder %s114, %s115
    %p129 = scmp.eq.s32.totalorder %s15, 4
    %p130 = por %p128, %p129
    %p132 = scmp.ne.s32.totalorder %s115, %s131
    %p133 = scmp.eq.s32.totalorder %s15, 0
    %p134 = por %p132, %p133
    %p135 = scmp.le.s32.totalorder 1, %s9
    %p136 = scmp.lt.s32.totalorder %s9, 6
    %p137 = pnand %p135, %p136
    %p138 = pneg %p137
    // Predicated region
    $region9: #{cube_sphere_conv2d.1} parent=5 // pred_check
      _
    $region10: #{cube_sphere_conv2d.1} parent=5 // pred_check_branch
      %140 = sbr.rel (%p137) target = $region12
    $region11: #{cube_sphere_conv2d.1} parent=5 // pred_region
      %s141 = ssub.s32 %s9, 1
    $region12: #{cube_sphere_conv2d.1} parent=5 // pred_fallthru
      _
    %p142 = scmp.lt.s32.totalorder %s9, 5
    // Predicated region
    $region13: #{cube_sphere_conv2d.1} parent=5 // pred_check
      %p143 = pneg %p142
    $region14: #{cube_sphere_conv2d.1} parent=5 // pred_check_branch
      %145 = sbr.rel (%p143) target = $region16
    $region15: #{cube_sphere_conv2d.1} parent=5 // pred_region
      // Predicated region
      $region17: #{cube_sphere_conv2d.1} parent=15 // pred_check
        %p146 = pneg %p41
      $region18: #{cube_sphere_conv2d.1} parent=15 // pred_check_branch
        %148 = sbr.rel (%p146) target = $region20
      $region19: #{cube_sphere_conv2d.1} parent=15 // pred_region
        %p149 = scmp.lt.s32.totalorder %s16, 4
        %s150 = scalar_select %p149, %s16, 4
        %s151 = smul.addr %s150, 6
        %s152 = smul.addr %s151, 8
        %s153 = scalar_lea.vmem %s0, %s152
      $region20: #{cube_sphere_conv2d.1} parent=15 // pred_fallthru
        _
      // Predicated region
      $region21: #{cube_sphere_conv2d.1} parent=15 // pred_check
        %p154 = pneg %p67
      $region22: #{cube_sphere_conv2d.1} parent=15 // pred_check_branch
        %156 = sbr.rel (%p154) target = $region24
      $region23: #{cube_sphere_conv2d.1} parent=15 // pred_region
        %p157 = scmp.lt.s32.totalorder %s16, 4
        %s158 = scalar_select %p157, %s16, 4
        %s159 = smul.addr %s158, 27
        %s160 = smul.addr %s159, 8
        %s161 = scalar_lea.vmem %s1, %s160
      $region24: #{cube_sphere_conv2d.1} parent=15 // pred_fallthru
        _
      // Predicated region
      $region25: #{cube_sphere_conv2d.1} parent=15 // pred_check
        %p162 = pneg %p93
      $region26: #{cube_sphere_conv2d.1} parent=15 // pred_check_branch
        %164 = sbr.rel (%p162) target = $region28
      $region27: #{cube_sphere_conv2d.1} parent=15 // pred_region
        %p165 = scmp.lt.s32.totalorder %s16, 4
        %s166 = scalar_select %p165, %s16, 4
        %s167 = scalar_lea.vmem %s2, %s166
      $region28: #{cube_sphere_conv2d.1} parent=15 // pred_fallthru
        _
    $region16: #{cube_sphere_conv2d.1} parent=5 // pred_fallthru
      _
    %p168 = scmp.le.s32.totalorder 1, %s9
    %p169 = scmp.lt.s32.totalorder %s9, 6
    %p170 = pnand %p168, %p169
    %p171 = pneg %p170
    // Predicated region
    $region29: #{cube_sphere_conv2d.1} parent=5 // pred_check
      _
    $region30: #{cube_sphere_conv2d.1} parent=5 // pred_check_branch
      %173 = sbr.rel (%p170) target = $region32
    $region31: #{cube_sphere_conv2d.1} parent=5 // pred_region
      %s174 = ssub.s32 %s9, 1
      %p175 = scmp.lt.s32.totalorder %s18, 4
      %s176 = scalar_select %p175, %s18, 4
      %s177 = smul.addr %s176, 6
      %s178 = smul.addr %s177, 8
      %s179 = scalar_lea.vmem %s0, %s178
      %p180 = pneg %p47
      %p181 = pneg %p44
      %p182 = scmp.lt.s32.totalorder %s18, 4
      %s183 = scalar_select %p182, %s18, 4
      %s184 = smul.addr %s183, 27
      %s185 = smul.addr %s184, 8
      %s186 = scalar_lea.vmem %s1, %s185
      %p187 = pneg %p73
      %p188 = pneg %p70
      %p189 = scmp.lt.s32.totalorder %s18, 4
      %s190 = scalar_select %p189, %s18, 4
      %s191 = scalar_lea.vmem %s2, %s190
      %p192 = pneg %p99
      %p193 = pneg %p96
      %p194 = pneg %p127
      %p195 = pneg %p124
      %s196 = smul.u32 2, %s19
      %p197 = scmp.lt.s32.totalorder %s18, 4
      %s198 = scalar_select %p197, %s18, 4
      %p199 = scmp.lt.s32.totalorder %s196, 1
      %s200 = scalar_select %p199, %s196, 1
      %s201 = smul.addr %s198, 4
      %s202 = sadd.s32 %s200, %s201
      %s203 = smul.addr %s202, 8
      %s204 = scalar_lea.vmem %s3, %s203
      %p205 = scmp.lt.s32.totalorder %s18, 4
      %s206 = scalar_select %p205, %s18, 4
      %s207 = smul.addr %s206, 6
      %s208 = smul.addr %s207, 8
      %s209 = scalar_lea.vmem %s0, %s208
      %p210 = scmp.lt.s32.totalorder %s18, 4
      %s211 = scalar_select %p210, %s18, 4
      %s212 = smul.addr %s211, 27
      %s213 = smul.addr %s212, 8
      %s214 = scalar_lea.vmem %s1, %s213
      %p215 = scmp.lt.s32.totalorder %s18, 4
      %s216 = scalar_select %p215, %s18, 4
      %s217 = scalar_lea.vmem %s2, %s216
      %s218 = smul.u32 2, %s19
      %p219 = scmp.lt.s32.totalorder %s18, 4
      %s220 = scalar_select %p219, %s18, 4
      %p221 = scmp.lt.s32.totalorder %s218, 1
      %s222 = scalar_select %p221, %s218, 1
      %s223 = smul.addr %s220, 4
      %s224 = sadd.s32 %s222, %s223
      %s225 = smul.addr %s224, 8
      %s226 = scalar_lea.vmem %s3, %s225
      %s227 = smul.u32 2, %s19
      %s228 = smul.u32 %s19, 16
      %s229 = scalar_lea.vmem %s209, %s228
      %v230 = vld [vmem:[%s229] sm:$0xff]
      %v231 = vld [vmem:[%s229 + $0x8] sm:$0xff]
      %v232 = vld [vmem:[%s229 + $0x18] sm:$0xff]
      %v233 = vld [vmem:[%s229 + $0x20] sm:$0xff]
      %s234 = sadd.s32 %s228, 1
      %s235 = scalar_lea.vmem %s209, %s234
      %v236 = vld [vmem:[%s235] sm:$0xff]
      %v237 = vld [vmem:[%s235 + $0x8] sm:$0xff]
      %v238 = vld [vmem:[%s235 + $0x18] sm:$0xff]
      %v239 = vld [vmem:[%s235 + $0x20] sm:$0xff]
      %s240 = sadd.s32 %s228, 2
      %s241 = scalar_lea.vmem %s209, %s240
      %v242 = vld [vmem:[%s241] sm:$0xff]
      %v243 = vld [vmem:[%s241 + $0x8] sm:$0xff]
      %v244 = vld [vmem:[%s241 + $0x18] sm:$0xff]
      %v245 = vld [vmem:[%s241 + $0x20] sm:$0xff]
      %250 = vrot.lane.b32.xlu0 %v236, 72
      %v251 = vpop.permute.xlu0 %250
      %252 = vrot.lane.b32.xlu0 %v237, 72
      %v253 = vpop.permute.xlu0 %252
      %254 = vrot.lane.b32.xlu0 %v238, 72
      %v255 = vpop.permute.xlu0 %254
      %256 = vrot.lane.b32.xlu0 %v239, 72
      %v257 = vpop.permute.xlu0 %256
      %266 = vrot.lane.b32.xlu0 %v242, 16
      %v267 = vpop.permute.xlu0 %266
      %268 = vrot.lane.b32.xlu0 %v243, 16
      %v269 = vpop.permute.xlu0 %268
      %270 = vrot.lane.b32.xlu0 %v244, 16
      %v271 = vpop.permute.xlu0 %270
      %272 = vrot.lane.b32.xlu0 %v245, 16
      %v273 = vpop.permute.xlu0 %272
      %vm278 = vcmask 588800
      %v279 = vsel %vm278, %v230, %v251
      %v280 = vsel %vm278, %v231, %v253
      %v281 = vsel %vm278, %v232, %v255
      %v282 = vsel %vm278, %v233, %v257
      %vm283 = vcmask 130048
      %v284 = vsel %vm283, %v251, %v267
      %v285 = vsel %vm283, %v253, %v269
      %v286 = vsel %vm283, %v255, %v271
      %v287 = vsel %vm283, %v257, %v273
      %v288 = vld [vmem:[%s214] sm:$0xff]
      %v289 = vld [vmem:[%s214 + $0x8] sm:$0xff]
      %v290 = vld [vmem:[%s214 + $0x10] sm:$0xff]
      %v291 = vld [vmem:[%s214 + $0x18] sm:$0xff]
      %v292 = vld [vmem:[%s214 + $0x20] sm:$0xff]
      %v293 = vld [vmem:[%s214 + $0x28] sm:$0xff]
      %v294 = vld [vmem:[%s214 + $0x30] sm:$0xff]
      %v295 = vld [vmem:[%s214 + $0x38] sm:$0xff]
      %v296 = vld [vmem:[%s214 + $0x40] sm:$0xff]
      %v297 = vld [vmem:[%s214 + $0x48] sm:$0xff]
      %v298 = vld [vmem:[%s214 + $0x50] sm:$0xff]
      %v299 = vld [vmem:[%s214 + $0x58] sm:$0xff]
      %v300 = vld [vmem:[%s214 + $0x60] sm:$0xff]
      %v301 = vld [vmem:[%s214 + $0x68] sm:$0xff]
      %v302 = vld [vmem:[%s214 + $0x70] sm:$0xff]
      %v303 = vld [vmem:[%s214 + $0x78] sm:$0xff]
      %v304 = vld [vmem:[%s214 + $0x80] sm:$0xff]
      %v305 = vld [vmem:[%s214 + $0x88] sm:$0xff]
      %v306 = vld [vmem:[%s214 + $0x90] sm:$0xff]
      %v307 = vld [vmem:[%s214 + $0x98] sm:$0xff]
      %v308 = vld [vmem:[%s214 + $0xa0] sm:$0xff]
      %v309 = vld [vmem:[%s214 + $0xa8] sm:$0xff]
      %v310 = vld [vmem:[%s214 + $0xb0] sm:$0xff]
      %v311 = vld [vmem:[%s214 + $0xb8] sm:$0xff]
      %v312 = vld [vmem:[%s214 + $0xc0] sm:$0xff]
      %v313 = vld [vmem:[%s214 + $0xc8] sm:$0xff]
      %v314 = vld [vmem:[%s214 + $0xd0] sm:$0xff]
      %v315 = vld [vmem:[%s217] sm:$0x1]
      %v317 = vlaneseq
      %v318 = vshrl.u32 %v317, 7
      %v319 = vsub.s32 0, %v318
      %v320 = vrot.slane %v315, %v319
      %vm322 = vcmask 719872
      %v324 = vsel %vm322, %v284, 0
      %v327 = vsel %vm322, %v285, 0
      %v330 = vsel %vm322, %v286, 0
      %v333 = vsel %vm322, %v287, 0
      %335 = vmatprep.subr.mxu0 0.0
      %336 = vmatpush1.msra.mxu0 %v288
      %337 = vmatprep.subr.mxu0 0.0
      %338 = vmatpush1.msra.mxu0 %v289
      %339 = vmatprep.subr.mxu0 0.0
      %340 = vmatpush1.msra.mxu0 %v290
      %341 = vmatprep.subr.mxu0 0.0
      %342 = vmatpush1.msra.mxu0 %v291
      %343 = vmatprep.subr.mxu0 0.0
      %344 = vmatpush1.msra.mxu0 %v292
      %345 = vmatprep.subr.mxu0 0.0
      %346 = vmatpush1.msra.mxu0 %v293
      %347 = vmatprep.subr.mxu0 0.0
      %348 = vmatpush1.msra.mxu0 %v294
      %349 = vmatprep.subr.mxu0 0.0
      %350 = vmatpush1.msra.mxu0 %v295
      %351 = vmatprep.subr.mxu0 0.0
      %352 = vmatpush1.msra.mxu0 %v296
      %353 = vmatprep.subr.mxu0 0.0
      %354 = vmatpush1.msra.mxu0 %v297
      %355 = vmatprep.subr.mxu0 0.0
      %356 = vmatpush1.msra.mxu0 %v298
      %357 = vmatprep.subr.mxu0 0.0
      %358 = vmatpush1.msra.mxu0 %v299
      %359 = vmatprep.subr.mxu0 0.0
      %360 = vmatpush1.msra.mxu0 %v300
      %361 = vmatprep.subr.mxu0 0.0
      %362 = vmatpush1.msra.mxu0 %v301
      %363 = vmatprep.subr.mxu0 0.0
      %364 = vmatpush1.msra.mxu0 %v302
      %365 = vmatprep.subr.mxu0 0.0
      %366 = vmatpush1.msra.mxu0 %v303
      %367 = vmatprep.subr.mxu0 0.0
      %368 = vmatpush1.msra.mxu0 %v304
      %369 = vmatprep.subr.mxu0 0.0
      %370 = vmatpush1.msra.mxu0 %v305
      %371 = vmatprep.subr.mxu0 0.0
      %372 = vmatpush1.msra.mxu0 %v306
      %373 = vmatprep.subr.mxu0 0.0
      %374 = vmatpush1.msra.mxu0 %v307
      %375 = vmatprep.subr.mxu0 0.0
      %376 = vmatpush1.msra.mxu0 %v308
      %377 = vmatprep.subr.mxu0 0.0
      %378 = vmatpush1.msra.mxu0 %v309
      %379 = vmatprep.subr.mxu0 0.0
      %380 = vmatpush1.msra.mxu0 %v310
      %381 = vmatprep.subr.mxu0 0.0
      %382 = vmatpush1.msra.mxu0 %v311
      %383 = vmatprep.subr.mxu0 0.0
      %384 = vmatpush1.msra.mxu0 %v312
      %385 = vmatprep.subr.mxu0 0.0
      %386 = vmatpush1.msra.mxu0 %v313
      %387 = vmatprep.subr.mxu0 0.0
      %388 = vmatpush1.msra.mxu0 %v314
      %389 = vmatprep.subr.mxu0 0.0
      %390 = vmatpush1.msra.mxu0 0.0
      %391 = vmatprep.subr.mxu0 0.0
      %392 = vmatpush1.msra.mxu0 0.0
      %393 = vmatprep.subr.mxu0 0.0
      %394 = vmatpush1.msra.mxu0 0.0
      %395 = vmatprep.subr.mxu0 0.0
      %396 = vmatpush1.msra.mxu0 0.0
      %397 = vmatprep.subr.mxu0 0.0
      %398 = vmatpush1.msra.mxu0 0.0
      %399 = vmatprep.mubr.f32.mxu0 %v324
      %400 = vmatmul.mubr.f32.gmra.mrb[0].mxu0 %v279
      %v401 = vpop.f32.mrb[0].mxu0
      %v402 = vadd.f32 %v320, %v401
      %v403 = vpop.f32.mrb[0].mxu0
      %404 = vmatprep.mubr.f32.mxu0 %v327
      %405 = vmatmul.mubr.f32.gmra.mrb[0].mxu0 %v280
      %v406 = vpop.f32.mrb[0].mxu0
      %v407 = vadd.f32 %v320, %v406
      %v408 = vpop.f32.mrb[0].mxu0
      %409 = vmatprep.mubr.f32.mxu0 %v330
      %410 = vmatmul.mubr.f32.gmra.mrb[0].mxu0 %v281
      %v411 = vpop.f32.mrb[0].mxu0
      %v412 = vadd.f32 %v320, %v411
      %v413 = vpop.f32.mrb[0].mxu0
      %414 = vmatprep.mubr.f32.mxu0 %v333
      %415 = vmatmul.mubr.f32.gmra.mrb[0].mxu0 %v282
      %v416 = vpop.f32.mrb[0].mxu0
      %v417 = vadd.f32 %v320, %v416
      %v418 = vpop.f32.mrb[0].mxu0
      %419 = vdwg.mxu0
      %420 = vst [vmem:[%s226] sm:$0xff] %v402
      %421 = vst [vmem:[%s226 + $0x8] sm:$0xff] %v407
      %422 = vst [vmem:[%s226 + $0x10] sm:$0xff] %v412
      %423 = vst [vmem:[%s226 + $0x18] sm:$0xff] %v417
      %s424 = smul.u32 2, %s19
      %p425 = scmp.lt.s32.totalorder %s18, 4
      %s426 = scalar_select %p425, %s18, 4
      %p427 = scmp.lt.s32.totalorder %s424, 1
      %s428 = scalar_select %p427, %s424, 1
      %s429 = smul.addr %s426, 4
      %s430 = sadd.s32 %s428, %s429
      %s431 = smul.addr %s430, 8
      %s432 = scalar_lea.vmem %s3, %s431
      // Predicated region
      $region33: #{cube_sphere_conv2d.1} parent=31 // pred_check
        %p433 = pneg %p124
      $region34: #{cube_sphere_conv2d.1} parent=31 // pred_check_branch
        %435 = sbr.rel (%p433) target = $region36
      $region35: #{cube_sphere_conv2d.1} parent=31 // pred_region
        %s436 = smul.u32 2, %s19
      $region36: #{cube_sphere_conv2d.1} parent=31 // pred_fallthru
        _
    $region32: #{cube_sphere_conv2d.1} parent=5 // pred_fallthru
      _
    %p437 = scmp.le.s32.totalorder 2, %s9
    // Predicated region
    $region37: #{cube_sphere_conv2d.1} parent=5 // pred_check
      %p438 = pneg %p437
    $region38: #{cube_sphere_conv2d.1} parent=5 // pred_check_branch
      %440 = sbr.rel (%p438) target = $region40
    $region39: #{cube_sphere_conv2d.1} parent=5 // pred_region
      %s441 = ssub.s32 %s9, 2
      // Predicated region
      $region41: #{cube_sphere_conv2d.1} parent=39 // pred_check
        %p442 = pneg %p130
      $region42: #{cube_sphere_conv2d.1} parent=39 // pred_check_branch
        %444 = sbr.rel (%p442) target = $region44
      $region43: #{cube_sphere_conv2d.1} parent=39 // pred_region
        %s445 = smul.u32 2, %s21
        %p446 = scmp.lt.s32.totalorder %s20, 4
        %s447 = scalar_select %p446, %s20, 4
        %p448 = scmp.lt.s32.totalorder %s445, 1
        %s449 = scalar_select %p448, %s445, 1
        %s450 = smul.addr %s447, 4
        %s451 = sadd.s32 %s449, %s450
        %s452 = smul.addr %s451, 8
        %s453 = scalar_lea.vmem %s3, %s452
      $region44: #{cube_sphere_conv2d.1} parent=39 // pred_fallthru
        _
    $region40: #{cube_sphere_conv2d.1} parent=5 // pred_fallthru
      _
  $region6: #{cube_sphere_conv2d.1} parent=0 // loop_footer
    %s13 = sadd.s32 1, %s9
  $region7: #{cube_sphere_conv2d.1} parent=0 // loop_footer_branch
    %8 = sbr.rel target = $region3
  $region8: #{cube_sphere_conv2d.1} parent=0 // loop_exit
    _

</llo_original>
